<compile_context>
chip_gen: v7x
topology: tpu7x:2x2x1
jax: 0.10.0
libtpu: 0.0.40
codegen_flags: <defaults>
</compile_context>

<pallas_src>
import functools
import math

import jax
import jax.numpy as jnp
from jax import lax
from jax.experimental import pallas as pl
from jax.experimental.pallas import tpu as pltpu


# ----------------------------- Kernel 1: fused QKV projection ----------------
def _qkv_proj_kernel(x_ref, w_ref, b_ref, qkv_ref):
    # x_ref: (1, TQ, E) bf16 ; w_ref: (E, 3*Hp) bf16 ; b_ref: (1, 3*Hp) f32
    # 1/sqrt(head_dim) is already folded into the q columns of w/b (host prep).
    z = jnp.dot(x_ref[0], w_ref[...], preferred_element_type=jnp.float32)
    qkv_ref[0] = (z + b_ref[...]).astype(qkv_ref.dtype)


# --------------------- Kernel 2: flash-style causal attention ----------------
def _flash_attn_kernel(q_sched_ref, kv_sched_ref,    # scalar-prefetch (SMEM)
                       q_ref, k_ref, v_ref, o_ref,   # blocked operands
                       m_sc, l_sc, acc_sc,           # VMEM scratch
                       *, tq, tk, nk):
    step = pl.program_id(1)
    qi = q_sched_ref[step]      # q tile index for this scheduled step
    ki = kv_sched_ref[step]     # kv tile index (0 .. diagonal tile only)

    @pl.when(ki == 0)
    def _init():
        m_sc[...] = jnp.full(m_sc.shape, -jnp.inf, dtype=m_sc.dtype)
        l_sc[...] = jnp.zeros(l_sc.shape, dtype=l_sc.dtype)
        acc_sc[...] = jnp.zeros(acc_sc.shape, dtype=acc_sc.dtype)

    # (TQ, TK) scores; contract the head dims directly (no explicit k.T / XLU).
    s = lax.dot_general(q_ref[0], k_ref[0], (((1,), (1,)), ((), ())),
                        preferred_element_type=jnp.float32)

    def online_update(scores):
        m_prev = m_sc[...]
        m_new = jnp.maximum(m_prev, jnp.max(scores, axis=-1, keepdims=True))
        alpha = jnp.exp(m_prev - m_new)
        p = jnp.exp(scores - m_new)
        l_sc[...] = alpha * l_sc[...] + jnp.sum(p, axis=-1, keepdims=True)
        acc_sc[...] = alpha * acc_sc[...] + jnp.dot(
            p.astype(v_ref.dtype), v_ref[0], preferred_element_type=jnp.float32)
        m_sc[...] = m_new

    # Build the causal mask only on tiles that straddle the diagonal.
    needs_mask = (ki + 1) * tk - 1 > qi * tq

    @pl.when(needs_mask)
    def _masked():
        row = qi * tq + lax.broadcasted_iota(jnp.int32, s.shape, 0)
        col = ki * tk + lax.broadcasted_iota(jnp.int32, s.shape, 1)
        online_update(jnp.where(col <= row, s, -jnp.inf))

    @pl.when(jnp.logical_not(needs_mask))
    def _unmasked():
        online_update(s)

    # Last kv tile scheduled for this q tile (the diagonal tile).
    last_kv = jnp.minimum(nk - 1, ((qi + 1) * tq - 1) // tk)

    @pl.when(ki == last_kv)
    def _finalize():
        o_ref[0] = (acc_sc[...] * pl.reciprocal(l_sc[...], approx=True)
                    ).astype(o_ref.dtype)


def _pick_tile(dim, candidates):
    for c in candidates:
        if dim % c == 0:
            return c
    return 128


def single_head_attention(x, wq, wk, wv, bq, bk, bv):
    """Causal single-head attention (eval mode).

    x        : (B, S, E) f32
    wq/wk/wv : (head_dim, E) f32   (PyTorch nn.Linear weight layout)
    bq/bk/bv : (head_dim,)   f32
    returns    (B, S, head_dim) f32
    """
    B, S, E = x.shape
    H = wq.shape[0]
    Hp = ((H + 127) // 128) * 128       # lane-dense padded head dim
    Sp = ((S + 127) // 128) * 128       # padded seq; tail hidden by causal mask
    TQ = _pick_tile(Sp, (512, 256, 128))   # big q tile -> K/V re-read traffic ~1/TQ
    TK = _pick_tile(Sp, (256, 128))        # 256 fills the 256-wide MXU on v6e/v7x
    nq, nk = Sp // TQ, Sp // TK
    inv_sqrt_d = 1.0 / math.sqrt(H)

    # One-time parameter prep: transpose to (E,H), zero-pad head dim, fold the
    # 1/sqrt(head_dim) scale into the q columns, fuse, cast weights to bf16.
    def prep_w(w, scale=1.0):
        return jnp.pad(w.T.astype(jnp.float32) * scale, ((0, 0), (0, Hp - H)))

    def prep_b(b, scale=1.0):
        return jnp.pad(b.reshape(1, H).astype(jnp.float32) * scale,
                       ((0, 0), (0, Hp - H)))

    w_fused = jnp.concatenate(
        [prep_w(wq, inv_sqrt_d), prep_w(wk), prep_w(wv)], axis=1
    ).astype(jnp.bfloat16)                                         # (E, 3*Hp)
    b_fused = jnp.concatenate(
        [prep_b(bq, inv_sqrt_d), prep_b(bk), prep_b(bv)], axis=1)  # (1, 3*Hp)

    x_p = jnp.pad(x, ((0, 0), (0, Sp - S), (0, 0))).astype(jnp.bfloat16)

    # Kernel 1: fused QKV projection (q columns pre-scaled by 1/sqrt(head_dim)).
    qkv = pl.pallas_call(
        _qkv_proj_kernel,
        out_shape=jax.ShapeDtypeStruct((B, Sp, 3 * Hp), jnp.bfloat16),
        grid_spec=pltpu.PrefetchScalarGridSpec(
            num_scalar_prefetch=0,
            grid=(B, nq),
            in_specs=[
                pl.BlockSpec((1, TQ, E), lambda b, i: (b, i, 0)),
                pl.BlockSpec((E, 3 * Hp), lambda b, i: (0, 0)),
                pl.BlockSpec((1, 3 * Hp), lambda b, i: (0, 0)),
            ],
            out_specs=pl.BlockSpec((1, TQ, 3 * Hp), lambda b, i: (b, i, 0)),
        ),
        compiler_params=pltpu.CompilerParams(
            dimension_semantics=("parallel", "parallel")),
    )(x_p, w_fused, b_fused)

    # Triangular schedule: only (q, kv) pairs at or below the diagonal are run,
    # so upper-triangle K/V tiles are neither DMA'd nor spent as empty steps.
    q_ids, kv_ids = [], []
    for qi in range(nq):
        last_kv = min(nk - 1, ((qi + 1) * TQ - 1) // TK)
        for ki in range(last_kv + 1):
            q_ids.append(qi)
            kv_ids.append(ki)
    q_sched = jnp.asarray(q_ids, dtype=jnp.int32)
    kv_sched = jnp.asarray(kv_ids, dtype=jnp.int32)
    n_sched = len(q_ids)

    # Kernel 2: flash-style causal attention over the q/k/v slices of qkv.
    out_padded = pl.pallas_call(
        functools.partial(_flash_attn_kernel, tq=TQ, tk=TK, nk=nk),
        out_shape=jax.ShapeDtypeStruct((B, Sp, Hp), jnp.float32),
        grid_spec=pltpu.PrefetchScalarGridSpec(
            num_scalar_prefetch=2,
            grid=(B, n_sched),
            in_specs=[
                pl.BlockSpec((1, TQ, Hp), lambda b, s, qs, ks: (b, qs[s], 0)),
                pl.BlockSpec((1, TK, Hp), lambda b, s, qs, ks: (b, ks[s], 1)),
                pl.BlockSpec((1, TK, Hp), lambda b, s, qs, ks: (b, ks[s], 2)),
            ],
            out_specs=pl.BlockSpec((1, TQ, Hp), lambda b, s, qs, ks: (b, qs[s], 0)),
            scratch_shapes=[
                pltpu.VMEM((TQ, 1), jnp.float32),    # running max  m
                pltpu.VMEM((TQ, 1), jnp.float32),    # running sum  l
                pltpu.VMEM((TQ, Hp), jnp.float32),   # output accumulator
            ],
        ),
        compiler_params=pltpu.CompilerParams(
            dimension_semantics=("parallel", "arbitrary")),
    )(q_sched, kv_sched, qkv, qkv, qkv)

    # TODO(synk): if the consumer accepts the padded (B, Sp, Hp) layout (or bf16),
    # drop this slice / store bf16 to halve the writeback traffic.
    return out_padded[:, :S, :H]


def reference_jax(x, wq, wk, wv, bq, bk, bv):
    """Pure-JAX f32 reference mirroring the PyTorch forward (eval mode)."""
    H = wq.shape[0]
    q = x @ wq.T + bq
    k = x @ wk.T + bk
    v = x @ wv.T + bv
    s = jnp.einsum("bqd,bkd->bqk", q, k)
    S = x.shape[1]
    causal = jnp.tril(jnp.ones((S, S), dtype=bool))
    s = jnp.where(causal, s, -jnp.inf) / math.sqrt(H)
    p = jax.nn.softmax(s, axis=-1)
    return p @ v


if __name__ == "__main__":
    def run_case(batch, seq_len, embedding_dim, n_head):
        head_dim = embedding_dim // n_head
        key = jax.random.PRNGKey(0)
        kx, kwq, kwk, kwv, kbq, kbk, kbv = jax.random.split(key, 7)
        x = jax.random.normal(kx, (batch, seq_len, embedding_dim), dtype=jnp.float32)

        # nn.Linear(embedding_dim, head_dim): weight (head_dim, E), bias (head_dim,)
        bound = 1.0 / math.sqrt(embedding_dim)

        def uinit(k, shape):
            return jax.random.uniform(k, shape, dtype=jnp.float32,
                                      minval=-bound, maxval=bound)

        wq = uinit(kwq, (head_dim, embedding_dim))
        wk = uinit(kwk, (head_dim, embedding_dim))
        wv = uinit(kwv, (head_dim, embedding_dim))
        bq = uinit(kbq, (head_dim,))
        bk = uinit(kbk, (head_dim,))
        bv = uinit(kbv, (head_dim,))

        out = single_head_attention(x, wq, wk, wv, bq, bk, bv)
        out = jax.block_until_ready(out)
        ref = reference_jax(x, wq, wk, wv, bq, bk, bv)
        assert out.shape == (batch, seq_len, head_dim)
        err = jnp.max(jnp.abs(out - ref))
        assert jnp.allclose(out, ref, atol=3e-2, rtol=3e-2), (
            f"mismatch vs reference (bf16 matmuls), max abs err {err:.4e}")

    # Small config consistent with the module (embedding_dim % n_head == 0).
    run_case(batch=2, seq_len=8, embedding_dim=32, n_head=4)
    # Multi-tile config exercising masked/unmasked branches at equal tiles.
    run_case(batch=2, seq_len=256, embedding_dim=32, n_head=4)
    # Unaligned S: exercises S-padding, TQ=512 / TK=256 tiles, triangular schedule.
    run_case(batch=1, seq_len=1000, embedding_dim=64, n_head=8)

    print("KERNEL_OK")
</pallas_src>

<mosaic_0001>
module attributes {stable_mosaic.version = 11 : i64} {
  func.func @_qkv_proj_kernel(%arg0: i32, %arg1: i32, %arg2: memref<1x128x32xbf16, #tpu.memory_space<vmem>>, %arg3: memref<32x384xbf16, #tpu.memory_space<vmem>>, %arg4: memref<1x384xf32, #tpu.memory_space<vmem>>, %arg5: memref<1x128x384xbf16, #tpu.memory_space<vmem>>) attributes {dimension_semantics = [#tpu.dimension_semantics<parallel>, #tpu.dimension_semantics<parallel>], iteration_bounds = array<i64: 2, 1>, scalar_prefetch = 0 : i64, scratch_operands = 0 : i64, tpu.core_type = #tpu.core_type<tc>, window_params = [{transform_indices = @transform_0, window_bounds = array<i64: 1, 128, 32>}, {pipeline_mode = #tpu.pipeline_mode<synchronous>, transform_indices = @transform_1, window_bounds = array<i64: 32, 384>}, {pipeline_mode = #tpu.pipeline_mode<synchronous>, transform_indices = @transform_2, window_bounds = array<i64: 1, 384>}, {transform_indices = @transform_3, window_bounds = array<i64: 1, 128, 384>}]} {
    %c0 = arith.constant 0 : index
    %c0_0 = arith.constant 0 : index
    %c0_1 = arith.constant 0 : index
    %0 = vector.load %arg2[%c0, %c0_0, %c0_1] : memref<1x128x32xbf16, #tpu.memory_space<vmem>>, vector<1x128x32xbf16>
    %1 = vector.shape_cast %0 : vector<1x128x32xbf16> to vector<128x32xbf16>
    %c0_2 = arith.constant 0 : index
    %c0_3 = arith.constant 0 : index
    %2 = vector.load %arg3[%c0_2, %c0_3] : memref<32x384xbf16, #tpu.memory_space<vmem>>, vector<32x384xbf16>
    %cst = arith.constant dense<0.000000e+00> : vector<128x384xf32>
    %3 = tpu.matmul %1, %2, %cst {dimension_numbers = #tpu.dot_dimension_numbers<[1], [0], [0], [1], [0, 0, 1, 1], [], []>} : vector<128x32xbf16>, vector<32x384xbf16>, vector<128x384xf32> -> vector<128x384xf32>
    %c0_4 = arith.constant 0 : index
    %c0_5 = arith.constant 0 : index
    %4 = vector.load %arg4[%c0_4, %c0_5] : memref<1x384xf32, #tpu.memory_space<vmem>>, vector<1x384xf32>
    %5 = vector.broadcast %4 : vector<1x384xf32> to vector<128x384xf32>
    %6 = arith.addf %3, %5 : vector<128x384xf32>
    %7 = arith.truncf %6 : vector<128x384xf32> to vector<128x384xbf16>
    %c0_6 = arith.constant 0 : index
    %c0_7 = arith.constant 0 : index
    %c0_8 = arith.constant 0 : index
    %8 = vector.load %arg5[%c0_6, %c0_7, %c0_8] : memref<1x128x384xbf16, #tpu.memory_space<vmem>>, vector<1x128x384xbf16>
    %9 = vector.shape_cast %8 : vector<1x128x384xbf16> to vector<128x384xbf16>
    %10 = vector.shape_cast %7 : vector<128x384xbf16> to vector<1x128x384xbf16>
    tpu.vector_store %arg5[%c0_6, %c0_7, %c0_8], %10 {strides = array<i32>} : memref<1x128x384xbf16, #tpu.memory_space<vmem>>, vector<1x128x384xbf16>,
    return
  }
  func.func @transform_0(%arg0: i32, %arg1: i32) -> (i32, i32, i32) {
    %c0_i32 = arith.constant 0 : i32
    %c0_i32_0 = arith.constant 0 : i32
    return %arg0, %arg1, %c0_i32 : i32, i32, i32
  }
  func.func @transform_1(%arg0: i32, %arg1: i32) -> (i32, i32) {
    %c0_i32 = arith.constant 0 : i32
    %c0_i32_0 = arith.constant 0 : i32
    %c0_i32_1 = arith.constant 0 : i32
    return %c0_i32, %c0_i32_0 : i32, i32
  }
  func.func @transform_2(%arg0: i32, %arg1: i32) -> (i32, i32) {
    %c0_i32 = arith.constant 0 : i32
    %c0_i32_0 = arith.constant 0 : i32
    %c0_i32_1 = arith.constant 0 : i32
    return %c0_i32, %c0_i32_0 : i32, i32
  }
  func.func @transform_3(%arg0: i32, %arg1: i32) -> (i32, i32, i32) {
    %c0_i32 = arith.constant 0 : i32
    %c0_i32_0 = arith.constant 0 : i32
    return %arg0, %arg1, %c0_i32 : i32, i32, i32
  }
}

</mosaic_0001>

<llo_original>
// kernel: tpu_custom_call.1
$region0: #{tpu_custom_call.1}
  #allocation0 [shape = 'u32[]', space=smem, size = 0x4, offset = 0x4, fixed_abs, tag = 'smem constant byte address 0x4 - core index']
  #allocation1 [shape = 'u32[144,128]{1,0:T(1,128)}', space=vmem, size = 0x12000, scoped, tag = 'internal scratch']
  %s0 = inlined_call_operand.vmem [shape: bf16[2,128,32], index: 0, kind: input, shape index: {}]
  %s1 = inlined_call_operand.vmem [shape: bf16[32,384], index: 1, kind: input, shape index: {}]
  %s2 = inlined_call_operand.vmem [shape: f32[1,384], index: 2, kind: input, shape index: {}]
  %s3 = inlined_call_operand.hbm [shape: bf16[2,128,384], index: 3, kind: output, shape index: {}]
  %s4 = sld [smem:[#allocation0]]
  $region45: #{tpu_custom_call.1} parent=0
    _
  %s6 = ssub.s32 1, %s4
  %s7 = scalar_select 0, %s6, %s4
  $region1: #{tpu_custom_call.1} parent=0
    #allocation2 [shape = 'u8[196608]{0}', space=vmem, size = 0x30000, scoped, tag = 'output window, operand 0']
    #allocation3 [shape = 's32[2]{0}', space=sflag, size = 0x8, scoped, tag = 'scoped memory for tpu_custom_call.1']
    %8 = vsyncpa [#allocation3], 0
    %s9 = scalar_lea.sflag [#allocation3], 1
    %10 = vsyncpa %s9, 0
    loop: start=0, step=1, limit=4
    $region2: #{tpu_custom_call.1} parent=1 // loop_pre_header
      _
    $region3: #{tpu_custom_call.1} parent=1 // loop_header
      %s12 = sphi 0, %s16
      %p13 = scmp.ge.s32.totalorder %s12, 4
      %s19 = sphi 0, %s31
      %s20 = sphi 0, %s27
      %s21 = sphi 0, %s19
      %s22 = sphi 0, %s20
      %s23 = sphi 0, %s21
      %s24 = sphi 0, %s22
      %s36 = sphi 0, %s38
      %s39 = sphi 0, %s36
      %s40 = sphi 0, %s39
      %s56 = sphi 0, %s40
      %s60 = sphi 0, %s60
      %s62 = sphi 0, %s60
      %s63 = sphi 0, %s62
      %s77 = sphi 0, %s63
      %s81 = sphi 0, %s81
      %s83 = sphi 0, %s81
      %s84 = sphi 0, %s83
      %s98 = sphi 0, %s84
      %s106 = sphi 0, %s108
      %s109 = sphi 0, %s106
      %s110 = sphi 0, %s109
      %s126 = sphi 0, %s110
    $region4: #{tpu_custom_call.1} parent=1 // loop_header_branch
      %15 = sbr.rel (%p13) target = $region8
    $region5: #{tpu_custom_call.1} parent=1 // loop_body
      %s17 = ssub.s32 %s12, 1
      %s18 = ssub.s32 %s12, 2
      %s25 = sadd.s32 1, %s20
      %p26 = scmp.ge.s32.totalorder %s25, 1
      %s27 = scalar_select %p26, 0, %s25
      %s28 = sadd.s32 1, %s19
      %s29 = scalar_select %p26, %s28, %s19
      %p30 = scmp.ge.s32.totalorder %s29, 2
      %s31 = scalar_select %p30, 0, %s29
      %s32 = ssub.s32 %s19, %s31
      %s33 = ssub.s32 %s20, %s27
      %s34 = sor.u32 %s32, %s33
      %p35 = scmp.eq.s32.totalorder %s34, 0
      %s37 = sadd.s32 %s36, 1
      %s38 = scalar_select %p35, %s36, %s37
      %p41 = pneg %p35
      %p42 = scmp.eq.s32.totalorder %s12, 1
      %p43 = por %p41, %p42
      %p44 = scmp.ne.s32.totalorder %s36, %s39
      %p45 = scmp.eq.s32.totalorder %s12, 0
      %p46 = por %p44, %p45
      %p47 = scmp.ne.s32.totalorder %s36, %s39
      %p48 = scmp.eq.s32.totalorder %s17, 1
      %p49 = por %p47, %p48
      %p50 = scmp.ne.s32.totalorder %s39, %s40
      %p51 = scmp.eq.s32.totalorder %s17, 0
      %p52 = por %p50, %p51
      %p53 = scmp.ne.s32.totalorder %s39, %s40
      %p54 = scmp.eq.s32.totalorder %s18, 1
      %p55 = por %p53, %p54
      %p57 = scmp.ne.s32.totalorder %s40, %s56
      %p58 = scmp.eq.s32.totalorder %s18, 0
      %p59 = por %p57, %p58
      %s61 = sadd.s32 %s60, 1
      %p64 = scmp.eq.s32.totalorder %s12, 1
      %p65 = scmp.ne.s32.totalorder %s60, %s62
      %p66 = scmp.eq.s32.totalorder %s12, 0
      %p67 = por %p65, %p66
      %p68 = scmp.ne.s32.totalorder %s60, %s62
      %p69 = scmp.eq.s32.totalorder %s17, 1
      %p70 = por %p68, %p69
      %p71 = scmp.ne.s32.totalorder %s62, %s63
      %p72 = scmp.eq.s32.totalorder %s17, 0
      %p73 = por %p71, %p72
      %p74 = scmp.ne.s32.totalorder %s62, %s63
      %p75 = scmp.eq.s32.totalorder %s18, 1
      %p76 = por %p74, %p75
      %p78 = scmp.ne.s32.totalorder %s63, %s77
      %p79 = scmp.eq.s32.totalorder %s18, 0
      %p80 = por %p78, %p79
      %s82 = sadd.s32 %s81, 1
      %p85 = scmp.eq.s32.totalorder %s12, 1
      %p86 = scmp.ne.s32.totalorder %s81, %s83
      %p87 = scmp.eq.s32.totalorder %s12, 0
      %p88 = por %p86, %p87
      %p89 = scmp.ne.s32.totalorder %s81, %s83
      %p90 = scmp.eq.s32.totalorder %s17, 1
      %p91 = por %p89, %p90
      %p92 = scmp.ne.s32.totalorder %s83, %s84
      %p93 = scmp.eq.s32.totalorder %s17, 0
      %p94 = por %p92, %p93
      %p95 = scmp.ne.s32.totalorder %s83, %s84
      %p96 = scmp.eq.s32.totalorder %s18, 1
      %p97 = por %p95, %p96
      %p99 = scmp.ne.s32.totalorder %s84, %s98
      %p100 = scmp.eq.s32.totalorder %s18, 0
      %p101 = por %p99, %p100
      %s102 = ssub.s32 %s19, %s31
      %s103 = ssub.s32 %s20, %s27
      %s104 = sor.u32 %s102, %s103
      %p105 = scmp.eq.s32.totalorder %s104, 0
      %s107 = sadd.s32 %s106, 1
      %s108 = scalar_select %p105, %s106, %s107
      %p111 = pneg %p105
      %p112 = scmp.eq.s32.totalorder %s12, 1
      %p113 = por %p111, %p112
      %p114 = scmp.ne.s32.totalorder %s106, %s109
      %p115 = scmp.eq.s32.totalorder %s12, 0
      %p116 = por %p114, %p115
      %p117 = scmp.ne.s32.totalorder %s106, %s109
      %p118 = scmp.eq.s32.totalorder %s17, 1
      %p119 = por %p117, %p118
      %p120 = scmp.ne.s32.totalorder %s109, %s110
      %p121 = scmp.eq.s32.totalorder %s17, 0
      %p122 = por %p120, %p121
      %p123 = scmp.ne.s32.totalorder %s109, %s110
      %p124 = scmp.eq.s32.totalorder %s18, 1
      %p125 = por %p123, %p124
      %p127 = scmp.ne.s32.totalorder %s110, %s126
      %p128 = scmp.eq.s32.totalorder %s18, 0
      %p129 = por %p127, %p128
      %p130 = scmp.le.s32.totalorder 1, %s12
      %p131 = scmp.lt.s32.totalorder %s12, 3
      %p132 = pnand %p130, %p131
      %p133 = pneg %p132
      // Predicated region
      $region9: #{tpu_custom_call.1} parent=5 // pred_check
        _
      $region10: #{tpu_custom_call.1} parent=5 // pred_check_branch
        %135 = sbr.rel (%p132) target = $region12
      $region11: #{tpu_custom_call.1} parent=5 // pred_region
        %s136 = ssub.s32 %s12, 1
        // Predicated region
        $region13: #{tpu_custom_call.1} parent=11 // pred_check
          %p137 = pneg %p73
        $region14: #{tpu_custom_call.1} parent=11 // pred_check_branch
          %139 = sbr.rel (%p137) target = $region16
        $region15: #{tpu_custom_call.1} parent=11 // pred_region
          _
        $region16: #{tpu_custom_call.1} parent=11 // pred_fallthru
          _
        // Predicated region
        $region17: #{tpu_custom_call.1} parent=11 // pred_check
          %p140 = pneg %p94
        $region18: #{tpu_custom_call.1} parent=11 // pred_check_branch
          %142 = sbr.rel (%p140) target = $region20
        $region19: #{tpu_custom_call.1} parent=11 // pred_region
          _
        $region20: #{tpu_custom_call.1} parent=11 // pred_fallthru
          _
      $region12: #{tpu_custom_call.1} parent=5 // pred_fallthru
        _
      %p143 = scmp.lt.s32.totalorder %s12, 2
      // Predicated region
      $region21: #{tpu_custom_call.1} parent=5 // pred_check
        %p144 = pneg %p143
      $region22: #{tpu_custom_call.1} parent=5 // pred_check_branch
        %146 = sbr.rel (%p144) target = $region24
      $region23: #{tpu_custom_call.1} parent=5 // pred_region
        // Predicated region
        $region25: #{tpu_custom_call.1} parent=23 // pred_check
          %p147 = pneg %p46
        $region26: #{tpu_custom_call.1} parent=23 // pred_check_branch
          %149 = sbr.rel (%p147) target = $region28
        $region27: #{tpu_custom_call.1} parent=23 // pred_region
          %s150 = smul.u32 16, %s20
          %p151 = scmp.lt.s32.totalorder %s19, 1
          %s152 = scalar_select %p151, %s19, 1
          %p153 = scmp.lt.s32.totalorder %s150, 15
          %s154 = scalar_select %p153, %s150, 15
          %s155 = smul.addr %s152, 16
          %s156 = sadd.s32 %s154, %s155
          %s157 = smul.addr %s156, 4
          %s158 = scalar_lea.vmem %s0, %s157
          %s159 = smul.u32 16, %s20
        $region28: #{tpu_custom_call.1} parent=23 // pred_fallthru
          _
      $region24: #{tpu_custom_call.1} parent=5 // pred_fallthru
        _
      %p160 = scmp.le.s32.totalorder 1, %s12
      %p161 = scmp.lt.s32.totalorder %s12, 3
      %p162 = pnand %p160, %p161
      %p163 = pneg %p162
      // Predicated region
      $region29: #{tpu_custom_call.1} parent=5 // pred_check
        _
      $region30: #{tpu_custom_call.1} parent=5 // pred_check_branch
        %165 = sbr.rel (%p162) target = $region32
      $region31: #{tpu_custom_call.1} parent=5 // pred_region
        %s166 = ssub.s32 %s12, 1
        %s167 = smul.u32 16, %s22
        %p168 = scmp.lt.s32.totalorder %s21, 1
        %s169 = scalar_select %p168, %s21, 1
        %p170 = scmp.lt.s32.totalorder %s167, 15
        %s171 = scalar_select %p170, %s167, 15
        %s172 = smul.addr %s169, 16
        %s173 = sadd.s32 %s171, %s172
        %s174 = smul.addr %s173, 4
        %s175 = scalar_lea.vmem %s0, %s174
        %p176 = pneg %p52
        %p177 = pneg %p49
        %p178 = pneg %p73
        %p179 = pneg %p70
        %p180 = pneg %p94
        %p181 = pneg %p91
        %p182 = pneg %p122
        %p183 = pneg %p119
        %s184 = sand.u32 %s109, 1
        %s185 = scalar_lea.sflag [#allocation3], %s184
        %s186 = sand.u32 %s109, 1
        %s187 = smul.addr %s186, 192
        %s188 = scalar_lea.vmem [#allocation2], %s187
        %s189 = smul.u32 16, %s22
        %p190 = scmp.lt.s32.totalorder %s21, 1
        %s191 = scalar_select %p190, %s21, 1
        %p192 = scmp.lt.s32.totalorder %s189, 15
        %s193 = scalar_select %p192, %s189, 15
        %s194 = smul.addr %s191, 16
        %s195 = sadd.s32 %s193, %s194
        %s196 = smul.addr %s195, 4
        %s197 = scalar_lea.vmem %s0, %s196
        %s198 = smul.u32 16, %s22
        %s199 = smul.u32 16, %s22
        %v201 = vld [vmem:[%s197] sm:$0xf]
        %v202 = vld [vmem:[%s197 + $0x4] sm:$0xf]
        %v203 = vld [vmem:[%s197 + $0x8] sm:$0xf]
        %v204 = vld [vmem:[%s197 + $0xc] sm:$0xf]
        %v205 = vld [vmem:[%s197 + $0x10] sm:$0xf]
        %v206 = vld [vmem:[%s197 + $0x14] sm:$0xf]
        %v207 = vld [vmem:[%s197 + $0x18] sm:$0xf]
        %v208 = vld [vmem:[%s197 + $0x1c] sm:$0xf]
        %v209 = vld [vmem:[%s197 + $0x20] sm:$0xf]
        %v210 = vld [vmem:[%s197 + $0x24] sm:$0xf]
        %v211 = vld [vmem:[%s197 + $0x28] sm:$0xf]
        %v212 = vld [vmem:[%s197 + $0x2c] sm:$0xf]
        %v213 = vld [vmem:[%s197 + $0x30] sm:$0xf]
        %v214 = vld [vmem:[%s197 + $0x34] sm:$0xf]
        %v215 = vld [vmem:[%s197 + $0x38] sm:$0xf]
        %v216 = vld [vmem:[%s197 + $0x3c] sm:$0xf]
        %v217 = vld [vmem:[%s1] sm:$0xff]
        %v218 = vld [vmem:[%s1 + $0x8] sm:$0xf]
        %v219 = vld [vmem:[%s1 + $0xc] sm:$0xff]
        %v220 = vld [vmem:[%s1 + $0x14] sm:$0xf]
        %v221 = vld [vmem:[%s1 + $0x18] sm:$0xff]
        %v222 = vld [vmem:[%s1 + $0x20] sm:$0xf]
        %v223 = vld [vmem:[%s1 + $0x24] sm:$0xff]
        %v224 = vld [vmem:[%s1 + $0x2c] sm:$0xf]
        %v225 = vld [vmem:[%s2] sm:$0x7]
        %v227 = vlaneseq
        %v228 = vshrl.u32 %v227, 7
        %v229 = vsub.s32 0, %v228
        %v230 = vrot.slane %v225, %v229
        %v231 = vlaneseq
        %v232 = vshrl.u32 %v231, 7
        %v233 = vsub.s32 1, %v232
        %v234 = vrot.slane %v225, %v233
        %v235 = vlaneseq
        %v236 = vshrl.u32 %v235, 7
        %v237 = vsub.s32 2, %v236
        %v238 = vrot.slane %v225, %v237
        %v258 = vunpack.c.l.b16 %v201
        %v259 = vunpack.c.l.b16 %v202
        %v260 = vunpack.c.l.b16 %v203
        %v261 = vunpack.c.l.b16 %v204
        %v262 = vunpack.c.l.b16 %v205
        %v263 = vunpack.c.l.b16 %v206
        %v264 = vunpack.c.l.b16 %v207
        %v265 = vunpack.c.l.b16 %v208
        %v266 = vunpack.c.l.b16 %v209
        %v267 = vunpack.c.l.b16 %v210
        %v268 = vunpack.c.l.b16 %v211
        %v269 = vunpack.c.l.b16 %v212
        %v270 = vunpack.c.l.b16 %v213
        %v271 = vunpack.c.l.b16 %v214
        %v272 = vunpack.c.l.b16 %v215
        %v273 = vunpack.c.l.b16 %v216
        %v274 = vpack.c.b16 %v259, %v258
        %v275 = vpack.c.b16 %v261, %v260
        %v276 = vpack.c.b16 %v263, %v262
        %v277 = vpack.c.b16 %v265, %v264
        %v278 = vpack.c.b16 %v267, %v266
        %v279 = vpack.c.b16 %v269, %v268
        %v280 = vpack.c.b16 %v271, %v270
        %v281 = vpack.c.b16 %v273, %v272
        %v290 = vunpack.c.l.b16 %v217
        %v291 = vunpack.c.h.b16 %v217
        %v292 = vunpack.c.l.b16 %v218
        %v293 = vunpack.c.l.b16 %v219
        %v294 = vunpack.c.h.b16 %v219
        %v295 = vunpack.c.l.b16 %v220
        %v296 = vunpack.c.l.b16 %v221
        %v297 = vunpack.c.h.b16 %v221
        %v298 = vunpack.c.l.b16 %v222
        %v299 = vunpack.c.l.b16 %v223
        %v300 = vunpack.c.h.b16 %v223
        %v301 = vunpack.c.l.b16 %v224
        %v302 = vpack.c.b16 %v293, %v290
        %v303 = vpack.c.b16 %v294, %v291
        %v304 = vpack.c.b16 %v295, %v292
        %v305 = vpack.c.b16 %v299, %v296
        %v306 = vpack.c.b16 %v300, %v297
        %v307 = vpack.c.b16 %v301, %v298
        %vm314 = vcmask 261120
        %v316 = vsel %vm314, %v274, 0
        %v319 = vsel %vm314, %v275, 0
        %v322 = vsel %vm314, %v276, 0
        %v325 = vsel %vm314, %v277, 0
        %v328 = vsel %vm314, %v278, 0
        %v331 = vsel %vm314, %v279, 0
        %v334 = vsel %vm314, %v280, 0
        %v337 = vsel %vm314, %v281, 0
        %339 = vmatprep.subr.bf16.mxu0 %v303
        %340 = vmatpush1.bf16.msra.mxu0 %v302
        %341 = vmatprep.subr.bf16.mxu0 %v306
        %342 = vmatpush1.bf16.msra.mxu0 %v305
        %343 = vmatprep.subr.bf16.mxu0 0
        %344 = vmatpush1.bf16.msra.mxu0 0
        %345 = vmatprep.subr.bf16.mxu0 0
        %346 = vmatpush1.bf16.msra.mxu0 0
        %347 = vmatprep.subr.bf16.mxu0 0
        %348 = vmatpush1.bf16.msra.mxu0 0
        %349 = vmatprep.subr.bf16.mxu0 0
        %350 = vmatpush1.bf16.msra.mxu0 0
        %351 = vmatprep.subr.bf16.mxu0 0
        %352 = vmatpush1.bf16.msra.mxu0 0
        %353 = vmatprep.subr.bf16.mxu0 0
        %354 = vmatpush1.bf16.msra.mxu0 0
        %355 = vmatprep.subr.bf16.mxu0 0
        %356 = vmatpush1.bf16.msra.mxu0 0
        %357 = vmatprep.subr.bf16.mxu0 0
        %358 = vmatpush1.bf16.msra.mxu0 0
        %359 = vmatprep.subr.bf16.mxu0 0
        %360 = vmatpush1.bf16.msra.mxu0 0
        %361 = vmatprep.subr.bf16.mxu0 0
        %362 = vmatpush1.bf16.msra.mxu0 0
        %363 = vmatprep.subr.bf16.mxu0 0
        %364 = vmatpush1.bf16.msra.mxu0 0
        %365 = vmatprep.subr.bf16.mxu0 0
        %366 = vmatpush1.bf16.msra.mxu0 0
        %367 = vmatprep.subr.bf16.mxu0 0
        %368 = vmatpush1.bf16.msra.mxu0 0
        %369 = vmatprep.subr.bf16.mxu0 0
        %370 = vmatpush1.bf16.msra.mxu0 0
        %371 = vmatprep.mubr.bf16.mxu0 0
        %372 = vmatmul.mubr.bf16.gmra.mrb[0].mxu0 %v316
        %v373 = vpop.f32.mrb[0].mxu0
        %v374 = vadd.f32 %v230, %v373
        %v375 = vpop.f32.mrb[0].mxu0
        %v376 = vadd.f32 %v234, %v375
        %v377 = vpop.f32.mrb[0].mxu0
        %v378 = vadd.f32 %v230, %v377
        %v379 = vpop.f32.mrb[0].mxu0
        %v380 = vadd.f32 %v234, %v379
        %381 = vmatprep.mubr.bf16.mxu0 0
        %382 = vmatmul.mubr.bf16.gmra.mrb[0].mxu0 %v319
        %v383 = vpop.f32.mrb[0].mxu0
        %v384 = vadd.f32 %v230, %v383
        %v385 = vpop.f32.mrb[0].mxu0
        %v386 = vadd.f32 %v234, %v385
        %v387 = vpop.f32.mrb[0].mxu0
        %v388 = vadd.f32 %v230, %v387
        %v389 = vpop.f32.mrb[0].mxu0
        %v390 = vadd.f32 %v234, %v389
        %391 = vmatprep.mubr.bf16.mxu0 0
        %392 = vmatmul.mubr.bf16.gmra.mrb[0].mxu0 %v322
        %v393 = vpop.f32.mrb[0].mxu0
        %v394 = vadd.f32 %v230, %v393
        %v395 = vpop.f32.mrb[0].mxu0
        %v396 = vadd.f32 %v234, %v395
        %v397 = vpop.f32.mrb[0].mxu0
        %v398 = vadd.f32 %v230, %v397
        %v399 = vpop.f32.mrb[0].mxu0
        %v400 = vadd.f32 %v234, %v399
        %401 = vmatprep.mubr.bf16.mxu0 0
        %402 = vmatmul.mubr.bf16.gmra.mrb[0].mxu0 %v325
        %v403 = vpop.f32.mrb[0].mxu0
        %v404 = vadd.f32 %v230, %v403
        %v405 = vpop.f32.mrb[0].mxu0
        %v406 = vadd.f32 %v234, %v405
        %v407 = vpop.f32.mrb[0].mxu0
        %v408 = vadd.f32 %v230, %v407
        %v409 = vpop.f32.mrb[0].mxu0
        %v410 = vadd.f32 %v234, %v409
        %411 = vmatprep.mubr.bf16.mxu0 0
        %412 = vmatmul.mubr.bf16.gmra.mrb[0].mxu0 %v328
        %v413 = vpop.f32.mrb[0].mxu0
        %v414 = vadd.f32 %v230, %v413
        %v415 = vpop.f32.mrb[0].mxu0
        %v416 = vadd.f32 %v234, %v415
        %v417 = vpop.f32.mrb[0].mxu0
        %v418 = vadd.f32 %v230, %v417
        %v419 = vpop.f32.mrb[0].mxu0
        %v420 = vadd.f32 %v234, %v419
        %421 = vmatprep.mubr.bf16.mxu0 0
        %422 = vmatmul.mubr.bf16.gmra.mrb[0].mxu0 %v331
        %v423 = vpop.f32.mrb[0].mxu0
        %v424 = vadd.f32 %v230, %v423
        %v425 = vpop.f32.mrb[0].mxu0
        %v426 = vadd.f32 %v234, %v425
        %v427 = vpop.f32.mrb[0].mxu0
        %v428 = vadd.f32 %v230, %v427
        %v429 = vpop.f32.mrb[0].mxu0
        %v430 = vadd.f32 %v234, %v429
        %431 = vmatprep.mubr.bf16.mxu0 0
        %432 = vmatmul.mubr.bf16.gmra.mrb[0].mxu0 %v334
        %v433 = vpop.f32.mrb[0].mxu0
        %v434 = vadd.f32 %v230, %v433
        %v435 = vpop.f32.mrb[0].mxu0
        %v436 = vadd.f32 %v234, %v435
        %v437 = vpop.f32.mrb[0].mxu0
        %v438 = vadd.f32 %v230, %v437
        %v439 = vpop.f32.mrb[0].mxu0
        %v440 = vadd.f32 %v234, %v439
        %441 = vmatprep.mubr.bf16.mxu0 0
        %442 = vmatmul.mubr.bf16.gmra.mrb[0].mxu0 %v337
        %v443 = vpop.f32.mrb[0].mxu0
        %v444 = vadd.f32 %v230, %v443
        %v445 = vpop.f32.mrb[0].mxu0
        %v446 = vadd.f32 %v234, %v445
        %v447 = vpop.f32.mrb[0].mxu0
        %v448 = vadd.f32 %v230, %v447
        %v449 = vpop.f32.mrb[0].mxu0
        %v450 = vadd.f32 %v234, %v449
        %451 = vdwg.mxu0
        %452 = vmatprep.subr.bf16.mxu0 0
        %453 = vmatpush1.bf16.msra.mxu0 %v304
        %454 = vmatprep.subr.bf16.mxu0 0
        %455 = vmatpush1.bf16.msra.mxu0 %v307
        %456 = vmatprep.subr.bf16.mxu0 0
        %457 = vmatpush1.bf16.msra.mxu0 0
        %458 = vmatprep.subr.bf16.mxu0 0
        %459 = vmatpush1.bf16.msra.mxu0 0
        %460 = vmatprep.subr.bf16.mxu0 0
        %461 = vmatpush1.bf16.msra.mxu0 0
        %462 = vmatprep.subr.bf16.mxu0 0
        %463 = vmatpush1.bf16.msra.mxu0 0
        %464 = vmatprep.subr.bf16.mxu0 0
        %465 = vmatpush1.bf16.msra.mxu0 0
        %466 = vmatprep.subr.bf16.mxu0 0
        %467 = vmatpush1.bf16.msra.mxu0 0
        %468 = vmatprep.subr.bf16.mxu0 0
        %469 = vmatpush1.bf16.msra.mxu0 0
        %470 = vmatprep.subr.bf16.mxu0 0
        %471 = vmatpush1.bf16.msra.mxu0 0
        %472 = vmatprep.subr.bf16.mxu0 0
        %473 = vmatpush1.bf16.msra.mxu0 0
        %474 = vmatprep.subr.bf16.mxu0 0
        %475 = vmatpush1.bf16.msra.mxu0 0
        %476 = vmatprep.subr.bf16.mxu0 0
        %477 = vmatpush1.bf16.msra.mxu0 0
        %478 = vmatprep.subr.bf16.mxu0 0
        %479 = vmatpush1.bf16.msra.mxu0 0
        %480 = vmatprep.subr.bf16.mxu0 0
        %481 = vmatpush1.bf16.msra.mxu0 0
        %482 = vmatprep.subr.bf16.mxu0 0
        %483 = vmatpush1.bf16.msra.mxu0 0
        %484 = vmatprep.mubr.bf16.mxu0 0
        %485 = vmatmul.mubr.bf16.gmra.mrb[0].mxu0 %v316
        %v486 = vpop.f32.mrb[0].mxu0
        %v487 = vadd.f32 %v238, %v486
        %v488 = vpop.f32.mrb[0].mxu0
        %v489 = vpop.f32.mrb[0].mxu0
        %v490 = vadd.f32 %v238, %v489
        %v491 = vpop.f32.mrb[0].mxu0
        %492 = vmatprep.mubr.bf16.mxu0 0
        %493 = vmatmul.mubr.bf16.gmra.mrb[0].mxu0 %v319
        %v494 = vpop.f32.mrb[0].mxu0
        %v495 = vadd.f32 %v238, %v494
        %v496 = vpop.f32.mrb[0].mxu0
        %v497 = vpop.f32.mrb[0].mxu0
        %v498 = vadd.f32 %v238, %v497
        %v499 = vpop.f32.mrb[0].mxu0
        %500 = vmatprep.mubr.bf16.mxu0 0
        %501 = vmatmul.mubr.bf16.gmra.mrb[0].mxu0 %v322
        %v502 = vpop.f32.mrb[0].mxu0
        %v503 = vadd.f32 %v238, %v502
        %v504 = vpop.f32.mrb[0].mxu0
        %v505 = vpop.f32.mrb[0].mxu0
        %v506 = vadd.f32 %v238, %v505
        %v507 = vpop.f32.mrb[0].mxu0
        %508 = vmatprep.mubr.bf16.mxu0 0
        %509 = vmatmul.mubr.bf16.gmra.mrb[0].mxu0 %v325
        %v510 = vpop.f32.mrb[0].mxu0
        %v511 = vadd.f32 %v238, %v510
        %v512 = vpop.f32.mrb[0].mxu0
        %v513 = vpop.f32.mrb[0].mxu0
        %v514 = vadd.f32 %v238, %v513
        %v515 = vpop.f32.mrb[0].mxu0
        %516 = vmatprep.mubr.bf16.mxu0 0
        %517 = vmatmul.mubr.bf16.gmra.mrb[0].mxu0 %v328
        %v518 = vpop.f32.mrb[0].mxu0
        %v519 = vadd.f32 %v238, %v518
        %v520 = vpop.f32.mrb[0].mxu0
        %v521 = vpop.f32.mrb[0].mxu0
        %v522 = vadd.f32 %v238, %v521
        %v523 = vpop.f32.mrb[0].mxu0
        %524 = vmatprep.mubr.bf16.mxu0 0
        %525 = vmatmul.mubr.bf16.gmra.mrb[0].mxu0 %v331
        %v526 = vpop.f32.mrb[0].mxu0
        %v527 = vadd.f32 %v238, %v526
        %v528 = vpop.f32.mrb[0].mxu0
        %v529 = vpop.f32.mrb[0].mxu0
        %v530 = vadd.f32 %v238, %v529
        %v531 = vpop.f32.mrb[0].mxu0
        %532 = vmatprep.mubr.bf16.mxu0 0
        %533 = vmatmul.mubr.bf16.gmra.mrb[0].mxu0 %v334
        %v534 = vpop.f32.mrb[0].mxu0
        %v535 = vadd.f32 %v238, %v534
        %v536 = vpop.f32.mrb[0].mxu0
        %v537 = vpop.f32.mrb[0].mxu0
        %v538 = vadd.f32 %v238, %v537
        %v539 = vpop.f32.mrb[0].mxu0
        %540 = vmatprep.mubr.bf16.mxu0 0
        %541 = vmatmul.mubr.bf16.gmra.mrb[0].mxu0 %v337
        %v542 = vpop.f32.mrb[0].mxu0
        %v543 = vadd.f32 %v238, %v542
        %v544 = vpop.f32.mrb[0].mxu0
        %v545 = vpop.f32.mrb[0].mxu0
        %v546 = vadd.f32 %v238, %v545
        %v547 = vpop.f32.mrb[0].mxu0
        %548 = vdwg.mxu0
        %v549 = vpack.c.bf16 %v378, %v374
        %v550 = vpack.c.bf16 %v380, %v376
        %v551 = vpack.c.bf16 %v490, %v487
        %v552 = vpack.c.bf16 %v388, %v384
        %v553 = vpack.c.bf16 %v390, %v386
        %v554 = vpack.c.bf16 %v498, %v495
        %v555 = vpack.c.bf16 %v398, %v394
        %v556 = vpack.c.bf16 %v400, %v396
        %v557 = vpack.c.bf16 %v506, %v503
        %v558 = vpack.c.bf16 %v408, %v404
        %v559 = vpack.c.bf16 %v410, %v406
        %v560 = vpack.c.bf16 %v514, %v511
        %v561 = vpack.c.bf16 %v418, %v414
        %v562 = vpack.c.bf16 %v420, %v416
        %v563 = vpack.c.bf16 %v522, %v519
        %v564 = vpack.c.bf16 %v428, %v424
        %v565 = vpack.c.bf16 %v430, %v426
        %v566 = vpack.c.bf16 %v530, %v527
        %v567 = vpack.c.bf16 %v438, %v434
        %v568 = vpack.c.bf16 %v440, %v436
        %v569 = vpack.c.bf16 %v538, %v535
        %v570 = vpack.c.bf16 %v448, %v444
        %v571 = vpack.c.bf16 %v450, %v446
        %v572 = vpack.c.bf16 %v546, %v543
        %v597 = vunpack.c.l.b16 %v549
        %v598 = vunpack.c.l.b16 %v550
        %v599 = vunpack.c.l.b16 %v551
        %v600 = vunpack.c.h.b16 %v549
        %v601 = vunpack.c.h.b16 %v550
        %v602 = vunpack.c.h.b16 %v551
        %v603 = vunpack.c.l.b16 %v552
        %v604 = vunpack.c.l.b16 %v553
        %v605 = vunpack.c.l.b16 %v554
        %v606 = vunpack.c.h.b16 %v552
        %v607 = vunpack.c.h.b16 %v553
        %v608 = vunpack.c.h.b16 %v554
        %v609 = vunpack.c.l.b16 %v555
        %v610 = vunpack.c.l.b16 %v556
        %v611 = vunpack.c.l.b16 %v557
        %v612 = vunpack.c.h.b16 %v555
        %v613 = vunpack.c.h.b16 %v556
        %v614 = vunpack.c.h.b16 %v557
        %v615 = vunpack.c.l.b16 %v558
        %v616 = vunpack.c.l.b16 %v559
        %v617 = vunpack.c.l.b16 %v560
        %v618 = vunpack.c.h.b16 %v558
        %v619 = vunpack.c.h.b16 %v559
        %v620 = vunpack.c.h.b16 %v560
        %v621 = vunpack.c.l.b16 %v561
        %v622 = vunpack.c.l.b16 %v562
        %v623 = vunpack.c.l.b16 %v563
        %v624 = vunpack.c.h.b16 %v561
        %v625 = vunpack.c.h.b16 %v562
        %v626 = vunpack.c.h.b16 %v563
        %v627 = vunpack.c.l.b16 %v564
        %v628 = vunpack.c.l.b16 %v565
        %v629 = vunpack.c.l.b16 %v566
        %v630 = vunpack.c.h.b16 %v564
        %v631 = vunpack.c.h.b16 %v565
        %v632 = vunpack.c.h.b16 %v566
        %v633 = vunpack.c.l.b16 %v567
        %v634 = vunpack.c.l.b16 %v568
        %v635 = vunpack.c.l.b16 %v569
        %v636 = vunpack.c.h.b16 %v567
        %v637 = vunpack.c.h.b16 %v568
        %v638 = vunpack.c.h.b16 %v569
        %v639 = vunpack.c.l.b16 %v570
        %v640 = vunpack.c.l.b16 %v571
        %v641 = vunpack.c.l.b16 %v572
        %v642 = vunpack.c.h.b16 %v570
        %v643 = vunpack.c.h.b16 %v571
        %v644 = vunpack.c.h.b16 %v572
        %v645 = vpack.c.b16 %v598, %v597
        %v646 = vpack.c.b16 %v599, %v599
        %v647 = vpack.c.b16 %v601, %v600
        %v648 = vpack.c.b16 %v602, %v602
        %v649 = vpack.c.b16 %v604, %v603
        %v650 = vpack.c.b16 %v605, %v605
        %v651 = vpack.c.b16 %v607, %v606
        %v652 = vpack.c.b16 %v608, %v608
        %v653 = vpack.c.b16 %v610, %v609
        %v654 = vpack.c.b16 %v611, %v611
        %v655 = vpack.c.b16 %v613, %v612
        %v656 = vpack.c.b16 %v614, %v614
        %v657 = vpack.c.b16 %v616, %v615
        %v658 = vpack.c.b16 %v617, %v617
        %v659 = vpack.c.b16 %v619, %v618
        %v660 = vpack.c.b16 %v620, %v620
        %v661 = vpack.c.b16 %v622, %v621
        %v662 = vpack.c.b16 %v623, %v623
        %v663 = vpack.c.b16 %v625, %v624
        %v664 = vpack.c.b16 %v626, %v626
        %v665 = vpack.c.b16 %v628, %v627
        %v666 = vpack.c.b16 %v629, %v629
        %v667 = vpack.c.b16 %v631, %v630
        %v668 = vpack.c.b16 %v632, %v632
        %v669 = vpack.c.b16 %v634, %v633
        %v670 = vpack.c.b16 %v635, %v635
        %v671 = vpack.c.b16 %v637, %v636
        %v672 = vpack.c.b16 %v638, %v638
        %v673 = vpack.c.b16 %v640, %v639
        %v674 = vpack.c.b16 %v641, %v641
        %v675 = vpack.c.b16 %v643, %v642
        %v676 = vpack.c.b16 %v644, %v644
        %709 = vst [vmem:[%s188] sm:$0xff] %v645
        %710 = vst [vmem:[%s188 + $0x8] sm:$0xf] %v646
        %711 = vst [vmem:[%s188 + $0xc] sm:$0xff] %v647
        %712 = vst [vmem:[%s188 + $0x14] sm:$0xf] %v648
        %713 = vst [vmem:[%s188 + $0x18] sm:$0xff] %v649
        %714 = vst [vmem:[%s188 + $0x20] sm:$0xf] %v650
        %715 = vst [vmem:[%s188 + $0x24] sm:$0xff] %v651
        %716 = vst [vmem:[%s188 + $0x2c] sm:$0xf] %v652
        %717 = vst [vmem:[%s188 + $0x30] sm:$0xff] %v653
        %718 = vst [vmem:[%s188 + $0x38] sm:$0xf] %v654
        %719 = vst [vmem:[%s188 + $0x3c] sm:$0xff] %v655
        %720 = vst [vmem:[%s188 + $0x44] sm:$0xf] %v656
        %721 = vst [vmem:[%s188 + $0x48] sm:$0xff] %v657
        %722 = vst [vmem:[%s188 + $0x50] sm:$0xf] %v658
        %723 = vst [vmem:[%s188 + $0x54] sm:$0xff] %v659
        %724 = vst [vmem:[%s188 + $0x5c] sm:$0xf] %v660
        %725 = vst [vmem:[%s188 + $0x60] sm:$0xff] %v661
        %726 = vst [vmem:[%s188 + $0x68] sm:$0xf] %v662
        %727 = vst [vmem:[%s188 + $0x6c] sm:$0xff] %v663
        %728 = vst [vmem:[%s188 + $0x74] sm:$0xf] %v664
        %729 = vst [vmem:[%s188 + $0x78] sm:$0xff] %v665
        %730 = vst [vmem:[%s188 + $0x80] sm:$0xf] %v666
        %731 = vst [vmem:[%s188 + $0x84] sm:$0xff] %v667
        %732 = vst [vmem:[%s188 + $0x8c] sm:$0xf] %v668
        %733 = vst [vmem:[%s188 + $0x90] sm:$0xff] %v669
        %734 = vst [vmem:[%s188 + $0x98] sm:$0xf] %v670
        %735 = vst [vmem:[%s188 + $0x9c] sm:$0xff] %v671
        %736 = vst [vmem:[%s188 + $0xa4] sm:$0xf] %v672
        %737 = vst [vmem:[%s188 + $0xa8] sm:$0xff] %v673
        %738 = vst [vmem:[%s188 + $0xb0] sm:$0xf] %v674
        %739 = vst [vmem:[%s188 + $0xb4] sm:$0xff] %v675
        %740 = vst [vmem:[%s188 + $0xbc] sm:$0xf] %v676
        %s741 = sand.u32 %s109, 1
        %s742 = scalar_lea.sflag [#allocation3], %s741
        %s743 = sand.u32 %s109, 1
        %s744 = smul.addr %s743, 192
        %s745 = scalar_lea.vmem [#allocation2], %s744
        // Predicated region
        $region33: #{tpu_custom_call.1} parent=31 // pred_check
          %p746 = pneg %p119
        $region34: #{tpu_custom_call.1} parent=31 // pred_check_branch
          %748 = sbr.rel (%p746) target = $region36
        $region35: #{tpu_custom_call.1} parent=31 // pred_region
          %s749 = smul.u32 16, %s22
          %s751 = ssub.s32 3072, 3072
          %752 = vsyncadd %s742, %s751
          %s753 = smul.addr %s749, 3
          %s754 = smul.addr %s21, 48
          %s755 = sadd.s32 %s753, %s754
          %s756 = smul.addr %s755, 64
          %s757 = scalar_lea.hbm %s3, %s756
          %s758 = sshll.u32 %s745, 4
          %s759 = int_to_ptr.vmem [resolvable:$true] %s758
          %764 = dma.vmem_to_hbm [thread:$0]  %s759, 3072, %s757, %s742, 192, 192, 12
        $region36: #{tpu_custom_call.1} parent=31 // pred_fallthru
          _
      $region32: #{tpu_custom_call.1} parent=5 // pred_fallthru
        _
      %p765 = scmp.le.s32.totalorder 2, %s12
      // Predicated region
      $region37: #{tpu_custom_call.1} parent=5 // pred_check
        %p766 = pneg %p765
      $region38: #{tpu_custom_call.1} parent=5 // pred_check_branch
        %768 = sbr.rel (%p766) target = $region40
      $region39: #{tpu_custom_call.1} parent=5 // pred_region
        %s769 = ssub.s32 %s12, 2
        // Predicated region
        $region41: #{tpu_custom_call.1} parent=39 // pred_check
          %p770 = pneg %p125
        $region42: #{tpu_custom_call.1} parent=39 // pred_check_branch
          %772 = sbr.rel (%p770) target = $region44
        $region43: #{tpu_custom_call.1} parent=39 // pred_region
          %s773 = sand.u32 %s110, 1
          %s774 = scalar_lea.sflag [#allocation3], %s773
          %s775 = sand.u32 %s110, 1
          %s776 = smul.addr %s775, 192
          %s777 = scalar_lea.vmem [#allocation2], %s776
          %778 = dma.done %s774, 3072
        $region44: #{tpu_custom_call.1} parent=39 // pred_fallthru
          _
      $region40: #{tpu_custom_call.1} parent=5 // pred_fallthru
        _
    $region6: #{tpu_custom_call.1} parent=1 // loop_footer
      %s16 = sadd.s32 1, %s12
    $region7: #{tpu_custom_call.1} parent=1 // loop_footer_branch
      %11 = sbr.rel target = $region3
    $region8: #{tpu_custom_call.1} parent=1 // loop_exit
      _
    %779 = vsyncpa [#allocation3], 1
    %s780 = scalar_lea.sflag [#allocation3], 1
    %781 = vsyncpa %s780, 1

</llo_original>
